<compile_context>
chip_gen: v5e
topology: v5e:2x2
jax: 0.10.0
libtpu: 0.0.40
codegen_flags: <defaults>
</compile_context>

<pallas_src>
import jax
import jax.numpy as jnp
from jax.experimental import pallas as pl
from jax.experimental.pallas import tpu as pltpu

BN_EPS = 1e-5


def mlp_kernel(x_ref, w1_ref, b1_ref, w2_ref, b2_ref,
               gamma_ref, beta_ref, w3_ref, b3_ref, o_ref):
    # fc1 + ReLU  (bf16 MXU operands, f32 accumulate; elementwise stays f32)
    h = jnp.dot(x_ref[...], w1_ref[...],
                preferred_element_type=jnp.float32) + b1_ref[...]
    h = jnp.maximum(h, 0.0)

    # fc2
    h = jnp.dot(h.astype(jnp.bfloat16), w2_ref[...],
                preferred_element_type=jnp.float32) + b2_ref[...]

    # BatchNorm1d (training-mode batch statistics, biased variance), f32 stats,
    # fused into a single scale/shift pass over h. rsqrt runs on the EUP slot.
    mean = jnp.mean(h, axis=0, keepdims=True)
    var = jnp.mean((h - mean) * (h - mean), axis=0, keepdims=True)
    scale = gamma_ref[...] * jax.lax.rsqrt(var + BN_EPS)
    shift = beta_ref[...] - mean * scale
    h = jnp.maximum(h * scale + shift, 0.0)

    # fc3 -> lane-dense (B, 128) output block (padded classes are zero weight/bias)
    o_ref[...] = (jnp.dot(h.astype(jnp.bfloat16), w3_ref[...],
                          preferred_element_type=jnp.float32)
                  + b3_ref[...]).astype(o_ref.dtype)


def mlp_forward(x_nchw, params):
    """x_nchw: (B, C, H, W) float32. Returns logits (B, output_dim) float32."""
    B = x_nchw.shape[0]
    x = x_nchw.reshape(B, -1)  # x.view(B, -1)

    w1, b1, w2, b2, gamma, beta, w3, b3 = params
    input_dim, hidden_dim = w1.shape
    out_dim = w3.shape[1]
    out_pad = max(128, ((out_dim + 127) // 128) * 128)  # lane-dense output width

    # bf16 MXU operands (f32 accumulation inside the kernel); biases/BN stay f32.
    x_bf = x.astype(jnp.bfloat16)
    w1_bf = w1.astype(jnp.bfloat16)
    w2_bf = w2.astype(jnp.bfloat16)
    w3_bf = jnp.zeros((hidden_dim, out_pad), jnp.bfloat16).at[:, :out_dim].set(
        w3.astype(jnp.bfloat16))
    b3_p = jnp.zeros((1, out_pad), jnp.float32).at[:, :out_dim].set(b3)

    flops = 2 * B * (input_dim * hidden_dim
                     + hidden_dim * hidden_dim
                     + hidden_dim * out_pad)
    operands = (x_bf, w1_bf, b1, w2_bf, b2, gamma, beta, w3_bf, b3_p)
    bytes_accessed = sum(int(a.size) * a.dtype.itemsize for a in operands) \
        + B * out_pad * 4
    cost = pl.CostEstimate(flops=flops,
                           transcendentals=hidden_dim,      # rsqrt per feature
                           bytes_accessed=bytes_accessed)

    # Whole problem fits comfortably in VMEM -> single grid point, full-array
    # blocks (block_shape == array shape satisfies the (8,128) rule).
    spec = lambda: pl.BlockSpec(memory_space=pltpu.VMEM)
    out_padded = pl.pallas_call(
        mlp_kernel,
        out_shape=jax.ShapeDtypeStruct((B, out_pad), jnp.float32),
        in_specs=[spec() for _ in range(9)],
        out_specs=spec(),
        cost_estimate=cost,
    )(*operands)
    return out_padded[:, :out_dim]


def init_params(key, input_dim, hidden_dim, output_dim):
    """Deterministic synthetic params. Linear weights stored as (in, out)."""
    ks = jax.random.split(key, 6)

    def lin(kw, kb, din, dout):
        bound = 1.0 / jnp.sqrt(din)
        w = jax.random.uniform(kw, (din, dout), jnp.float32, -bound, bound)
        b = jax.random.uniform(kb, (1, dout), jnp.float32, -bound, bound)
        return w, b

    w1, b1 = lin(ks[0], ks[1], input_dim, hidden_dim)
    w2, b2 = lin(ks[2], ks[3], hidden_dim, hidden_dim)
    w3, b3 = lin(ks[4], ks[5], hidden_dim, output_dim)
    gamma = jnp.ones((1, hidden_dim), jnp.float32)
    beta = jnp.zeros((1, hidden_dim), jnp.float32)
    return (w1, b1, w2, b2, gamma, beta, w3, b3)


def mlp_reference(x_nchw, params):
    """Pure-JAX reference with matching numerics (bf16 MXU operands, f32 accum)."""
    B = x_nchw.shape[0]
    x = x_nchw.reshape(B, -1).astype(jnp.bfloat16)
    w1, b1, w2, b2, gamma, beta, w3, b3 = params
    h = jnp.dot(x, w1.astype(jnp.bfloat16),
                preferred_element_type=jnp.float32) + b1
    h = jnp.maximum(h, 0.0)
    h = jnp.dot(h.astype(jnp.bfloat16), w2.astype(jnp.bfloat16),
                preferred_element_type=jnp.float32) + b2
    mean = jnp.mean(h, axis=0, keepdims=True)
    var = jnp.mean((h - mean) ** 2, axis=0, keepdims=True)
    h = (h - mean) * jax.lax.rsqrt(var + BN_EPS) * gamma + beta
    h = jnp.maximum(h, 0.0)
    return jnp.dot(h.astype(jnp.bfloat16), w3.astype(jnp.bfloat16),
                   preferred_element_type=jnp.float32) + b3


if __name__ == "__main__":
    # Small MNIST-like shapes: batch=2, 1x16x16 image -> input_dim=256,
    # hidden_dim=128, output_dim=10 classes.
    B, C, H, W = 2, 1, 16, 16
    input_dim, hidden_dim, output_dim = C * H * W, 128, 10

    key = jax.random.PRNGKey(0)
    kx, kp = jax.random.split(key)
    x = jax.random.normal(kx, (B, C, H, W), jnp.float32)
    params = init_params(kp, input_dim, hidden_dim, output_dim)

    out = mlp_forward(x, params)
    out = jax.block_until_ready(out)

    ref = mlp_reference(x, params)
    assert out.shape == (B, output_dim)
    assert jnp.allclose(out, ref, atol=2e-3, rtol=2e-3), "mismatch vs reference"

    print("KERNEL_OK")
</pallas_src>

<mosaic_0001>
module attributes {stable_mosaic.version = 11 : i64} {
  func.func @mlp_kernel(%arg0: memref<2x256xbf16, #tpu.memory_space<vmem>>, %arg1: memref<256x128xbf16, #tpu.memory_space<vmem>>, %arg2: memref<1x128xf32, #tpu.memory_space<vmem>>, %arg3: memref<128x128xbf16, #tpu.memory_space<vmem>>, %arg4: memref<1x128xf32, #tpu.memory_space<vmem>>, %arg5: memref<1x128xf32, #tpu.memory_space<vmem>>, %arg6: memref<1x128xf32, #tpu.memory_space<vmem>>, %arg7: memref<128x128xbf16, #tpu.memory_space<vmem>>, %arg8: memref<1x128xf32, #tpu.memory_space<vmem>>, %arg9: memref<2x128xf32, #tpu.memory_space<vmem>>) attributes {dimension_semantics = [], scalar_prefetch = 0 : i64, scratch_operands = 0 : i64, tpu.core_type = #tpu.core_type<tc>} {
    %c0 = arith.constant 0 : index
    %c0_0 = arith.constant 0 : index
    %0 = vector.load %arg0[%c0, %c0_0] : memref<2x256xbf16, #tpu.memory_space<vmem>>, vector<2x256xbf16>
    %c0_1 = arith.constant 0 : index
    %c0_2 = arith.constant 0 : index
    %1 = vector.load %arg1[%c0_1, %c0_2] : memref<256x128xbf16, #tpu.memory_space<vmem>>, vector<256x128xbf16>
    %cst = arith.constant dense<0.000000e+00> : vector<2x128xf32>
    %2 = tpu.matmul %0, %1, %cst {dimension_numbers = #tpu.dot_dimension_numbers<[1], [0], [0], [1], [0, 0, 1, 1], [], []>} : vector<2x256xbf16>, vector<256x128xbf16>, vector<2x128xf32> -> vector<2x128xf32>
    %c0_3 = arith.constant 0 : index
    %c0_4 = arith.constant 0 : index
    %3 = vector.load %arg2[%c0_3, %c0_4] : memref<1x128xf32, #tpu.memory_space<vmem>>, vector<1x128xf32>
    %4 = vector.broadcast %3 : vector<1x128xf32> to vector<2x128xf32>
    %5 = arith.addf %2, %4 : vector<2x128xf32>
    %cst_5 = arith.constant 0.000000e+00 : f32
    %6 = vector.broadcast %cst_5 : f32 to vector<2x128xf32>
    %7 = arith.maximumf %5, %6 : vector<2x128xf32>
    %8 = arith.truncf %7 : vector<2x128xf32> to vector<2x128xbf16>
    %c0_6 = arith.constant 0 : index
    %c0_7 = arith.constant 0 : index
    %9 = vector.load %arg3[%c0_6, %c0_7] : memref<128x128xbf16, #tpu.memory_space<vmem>>, vector<128x128xbf16>
    %cst_8 = arith.constant dense<0.000000e+00> : vector<2x128xf32>
    %10 = tpu.matmul %8, %9, %cst_8 {dimension_numbers = #tpu.dot_dimension_numbers<[1], [0], [0], [1], [0, 0, 1, 1], [], []>} : vector<2x128xbf16>, vector<128x128xbf16>, vector<2x128xf32> -> vector<2x128xf32>
    %c0_9 = arith.constant 0 : index
    %c0_10 = arith.constant 0 : index
    %11 = vector.load %arg4[%c0_9, %c0_10] : memref<1x128xf32, #tpu.memory_space<vmem>>, vector<1x128xf32>
    %12 = vector.broadcast %11 : vector<1x128xf32> to vector<2x128xf32>
    %13 = arith.addf %10, %12 : vector<2x128xf32>
    %cst_11 = arith.constant dense<0.000000e+00> : vector<128xf32>
    %14 = vector.multi_reduction <add>, %13, %cst_11 [0] : vector<2x128xf32> to vector<128xf32>
    %15 = vector.shape_cast %14 : vector<128xf32> to vector<1x128xf32>
    %cst_12 = arith.constant 2.000000e+00 : f32
    %16 = vector.broadcast %cst_12 : f32 to vector<1x128xf32>
    %17 = arith.divf %15, %16 : vector<1x128xf32>
    %18 = vector.broadcast %17 : vector<1x128xf32> to vector<2x128xf32>
    %19 = arith.subf %13, %18 : vector<2x128xf32>
    %20 = vector.broadcast %17 : vector<1x128xf32> to vector<2x128xf32>
    %21 = arith.subf %13, %20 : vector<2x128xf32>
    %22 = arith.mulf %19, %21 : vector<2x128xf32>
    %cst_13 = arith.constant dense<0.000000e+00> : vector<128xf32>
    %23 = vector.multi_reduction <add>, %22, %cst_13 [0] : vector<2x128xf32> to vector<128xf32>
    %24 = vector.shape_cast %23 : vector<128xf32> to vector<1x128xf32>
    %cst_14 = arith.constant 2.000000e+00 : f32
    %25 = vector.broadcast %cst_14 : f32 to vector<1x128xf32>
    %26 = arith.divf %24, %25 : vector<1x128xf32>
    %c0_15 = arith.constant 0 : index
    %c0_16 = arith.constant 0 : index
    %27 = vector.load %arg5[%c0_15, %c0_16] : memref<1x128xf32, #tpu.memory_space<vmem>>, vector<1x128xf32>
    %cst_17 = arith.constant 9.99999974E-6 : f32
    %28 = vector.broadcast %cst_17 : f32 to vector<1x128xf32>
    %29 = arith.addf %26, %28 : vector<1x128xf32>
    %30 = math.rsqrt %29 : vector<1x128xf32>
    %31 = arith.mulf %27, %30 : vector<1x128xf32>
    %c0_18 = arith.constant 0 : index
    %c0_19 = arith.constant 0 : index
    %32 = vector.load %arg6[%c0_18, %c0_19] : memref<1x128xf32, #tpu.memory_space<vmem>>, vector<1x128xf32>
    %33 = arith.mulf %17, %31 : vector<1x128xf32>
    %34 = arith.subf %32, %33 : vector<1x128xf32>
    %35 = vector.broadcast %31 : vector<1x128xf32> to vector<2x128xf32>
    %36 = arith.mulf %13, %35 : vector<2x128xf32>
    %37 = vector.broadcast %34 : vector<1x128xf32> to vector<2x128xf32>
    %38 = arith.addf %36, %37 : vector<2x128xf32>
    %cst_20 = arith.constant 0.000000e+00 : f32
    %39 = vector.broadcast %cst_20 : f32 to vector<2x128xf32>
    %40 = arith.maximumf %38, %39 : vector<2x128xf32>
    %41 = arith.truncf %40 : vector<2x128xf32> to vector<2x128xbf16>
    %c0_21 = arith.constant 0 : index
    %c0_22 = arith.constant 0 : index
    %42 = vector.load %arg7[%c0_21, %c0_22] : memref<128x128xbf16, #tpu.memory_space<vmem>>, vector<128x128xbf16>
    %cst_23 = arith.constant dense<0.000000e+00> : vector<2x128xf32>
    %43 = tpu.matmul %41, %42, %cst_23 {dimension_numbers = #tpu.dot_dimension_numbers<[1], [0], [0], [1], [0, 0, 1, 1], [], []>} : vector<2x128xbf16>, vector<128x128xbf16>, vector<2x128xf32> -> vector<2x128xf32>
    %c0_24 = arith.constant 0 : index
    %c0_25 = arith.constant 0 : index
    %44 = vector.load %arg8[%c0_24, %c0_25] : memref<1x128xf32, #tpu.memory_space<vmem>>, vector<1x128xf32>
    %45 = vector.broadcast %44 : vector<1x128xf32> to vector<2x128xf32>
    %46 = arith.addf %43, %45 : vector<2x128xf32>
    %c0_26 = arith.constant 0 : index
    %c0_27 = arith.constant 0 : index
    %47 = vector.load %arg9[%c0_26, %c0_27] : memref<2x128xf32, #tpu.memory_space<vmem>>, vector<2x128xf32>
    tpu.vector_store %arg9[%c0_26, %c0_27], %46 {strides = array<i32>} : memref<2x128xf32, #tpu.memory_space<vmem>>, vector<2x128xf32>,
    return
  }
}

</mosaic_0001>

<llo_original>
// kernel: tpu_custom_call.1
$region0: #{tpu_custom_call.1}
  #allocation0 [shape = 'u32[]', space=smem, size = 0x4, offset = 0x4, fixed_abs, tag = 'smem constant byte address 0x4 - core index']
  #allocation1 [shape = 'u32[72,128]{1,0:T(1,128)}', space=vmem, size = 0x9000, scoped, tag = 'internal scratch']
  %s0 = inlined_call_operand.hbm [shape: bf16[2,256], index: 0, kind: input, shape index: {}]
  %s1 = inlined_call_operand.hbm [shape: bf16[256,128], index: 1, kind: input, shape index: {}]
  %s2 = inlined_call_operand.vmem [shape: f32[1,128], index: 2, kind: input, shape index: {}]
  %s3 = inlined_call_operand.hbm [shape: bf16[128,128], index: 3, kind: input, shape index: {}]
  %s4 = inlined_call_operand.vmem [shape: f32[1,128], index: 4, kind: input, shape index: {}]
  %s5 = inlined_call_operand.vmem [shape: f32[1,128], index: 5, kind: input, shape index: {}]
  %s6 = inlined_call_operand.vmem [shape: f32[1,128], index: 6, kind: input, shape index: {}]
  %s7 = inlined_call_operand.hbm [shape: bf16[128,128], index: 7, kind: input, shape index: {}]
  %s8 = inlined_call_operand.vmem [shape: f32[1,128], index: 8, kind: input, shape index: {}]
  %s9 = inlined_call_operand.hbm [shape: f32[2,128], index: 9, kind: output, shape index: {}]
  %s10 = sld [smem:[#allocation0]]
  $region62: #{tpu_custom_call.1} parent=0
    _
  %s12 = ssub.s32 1, %s10
  %s13 = scalar_select 0, %s12, %s10
  $region1: #{tpu_custom_call.1} parent=0
    #allocation2 [shape = 'u8[1024]{0}', space=vmem, size = 0x400, scoped, tag = 'input window, operand 0, single buffered']
    #allocation3 [shape = 's32[1]{0}', space=sflag, size = 0x4, scoped, tag = 'scoped memory for tpu_custom_call.1']
    #allocation4 [shape = 's32[1]{0}', space=sflag, size = 0x4, scoped, tag = 'scoped memory for tpu_custom_call.1']
    #allocation5 [shape = 'u8[65536]{0}', space=vmem, size = 0x10000, scoped, tag = 'input window, operand 1, single buffered']
    #allocation6 [shape = 's32[1]{0}', space=sflag, size = 0x4, scoped, tag = 'scoped memory for tpu_custom_call.1']
    #allocation7 [shape = 'u8[32768]{0}', space=vmem, size = 0x8000, scoped, tag = 'input window, operand 3, single buffered']
    #allocation8 [shape = 'u8[32768]{0}', space=vmem, size = 0x8000, scoped, tag = 'input window, operand 7, single buffered']
    #allocation9 [shape = 's32[1]{0}', space=sflag, size = 0x4, scoped, tag = 'scoped memory for tpu_custom_call.1']
    #allocation10 [shape = 'u8[1024]{0}', space=vmem, size = 0x400, scoped, tag = 'output window, operand 0, single buffered']
    %14 = vsyncpa [#allocation3], 0
    %15 = vsyncpa [#allocation6], 0
    %16 = vsyncpa [#allocation9], 0
    %17 = vsyncpa [#allocation4], 0
    // Predicated region
    $region2: #{tpu_custom_call.1} parent=1 // pred_check
      _
    $region3: #{tpu_custom_call.1} parent=1 // pred_check_branch
      %19 = sbr.rel (0) target = $region5
    $region4: #{tpu_custom_call.1} parent=1 // pred_region
      %21 = vsyncadd [#allocation3], 0
      %s23 = sshll.u32 %s0, 4
      %s24 = int_to_ptr.hbm [resolvable:$true] %s23
      %s25 = sshll.u32 [#allocation2], 4
      %s26 = int_to_ptr.vmem [resolvable:$true] %s25
      %28 = dma.hbm_to_vmem [thread:$0]  %s24, 32, %s26, [#allocation3]
    $region5: #{tpu_custom_call.1} parent=1 // pred_fallthru
      _
    // Predicated region
    $region6: #{tpu_custom_call.1} parent=1 // pred_check
      _
    $region7: #{tpu_custom_call.1} parent=1 // pred_check_branch
      %30 = sbr.rel (0) target = $region9
    $region8: #{tpu_custom_call.1} parent=1 // pred_region
      %32 = vsyncadd [#allocation6], 0
      %s33 = sshll.u32 %s1, 4
      %s34 = int_to_ptr.hbm [resolvable:$true] %s33
      %s35 = sshll.u32 [#allocation5], 4
      %s36 = int_to_ptr.vmem [resolvable:$true] %s35
      %41 = dma.hbm_to_vmem [thread:$0]  %s34, 2048, %s36, [#allocation6], 64, 64, 4
    $region9: #{tpu_custom_call.1} parent=1 // pred_fallthru
      _
    // Predicated region
    $region10: #{tpu_custom_call.1} parent=1 // pred_check
      _
    $region11: #{tpu_custom_call.1} parent=1 // pred_check_branch
      %43 = sbr.rel (0) target = $region13
    $region12: #{tpu_custom_call.1} parent=1 // pred_region
      _
    $region13: #{tpu_custom_call.1} parent=1 // pred_fallthru
      _
    // Predicated region
    $region14: #{tpu_custom_call.1} parent=1 // pred_check
      _
    $region15: #{tpu_custom_call.1} parent=1 // pred_check_branch
      %45 = sbr.rel (0) target = $region17
    $region16: #{tpu_custom_call.1} parent=1 // pred_region
      %47 = vsyncadd [#allocation6], 0
      %s48 = sshll.u32 %s3, 4
      %s49 = int_to_ptr.hbm [resolvable:$true] %s48
      %s50 = sshll.u32 [#allocation7], 4
      %s51 = int_to_ptr.vmem [resolvable:$true] %s50
      %56 = dma.hbm_to_vmem [thread:$0]  %s49, 1024, %s51, [#allocation6], 64, 64, 4
    $region17: #{tpu_custom_call.1} parent=1 // pred_fallthru
      _
    // Predicated region
    $region18: #{tpu_custom_call.1} parent=1 // pred_check
      _
    $region19: #{tpu_custom_call.1} parent=1 // pred_check_branch
      %58 = sbr.rel (0) target = $region21
    $region20: #{tpu_custom_call.1} parent=1 // pred_region
      _
    $region21: #{tpu_custom_call.1} parent=1 // pred_fallthru
      _
    // Predicated region
    $region22: #{tpu_custom_call.1} parent=1 // pred_check
      _
    $region23: #{tpu_custom_call.1} parent=1 // pred_check_branch
      %60 = sbr.rel (0) target = $region25
    $region24: #{tpu_custom_call.1} parent=1 // pred_region
      _
    $region25: #{tpu_custom_call.1} parent=1 // pred_fallthru
      _
    // Predicated region
    $region26: #{tpu_custom_call.1} parent=1 // pred_check
      _
    $region27: #{tpu_custom_call.1} parent=1 // pred_check_branch
      %62 = sbr.rel (0) target = $region29
    $region28: #{tpu_custom_call.1} parent=1 // pred_region
      _
    $region29: #{tpu_custom_call.1} parent=1 // pred_fallthru
      _
    // Predicated region
    $region30: #{tpu_custom_call.1} parent=1 // pred_check
      _
    $region31: #{tpu_custom_call.1} parent=1 // pred_check_branch
      %64 = sbr.rel (0) target = $region33
    $region32: #{tpu_custom_call.1} parent=1 // pred_region
      %66 = vsyncadd [#allocation9], 0
      %s67 = sshll.u32 %s7, 4
      %s68 = int_to_ptr.hbm [resolvable:$true] %s67
      %s69 = sshll.u32 [#allocation8], 4
      %s70 = int_to_ptr.vmem [resolvable:$true] %s69
      %75 = dma.hbm_to_vmem [thread:$0]  %s68, 1024, %s70, [#allocation9], 64, 64, 4
    $region33: #{tpu_custom_call.1} parent=1 // pred_fallthru
      _
    // Predicated region
    $region34: #{tpu_custom_call.1} parent=1 // pred_check
      _
    $region35: #{tpu_custom_call.1} parent=1 // pred_check_branch
      %77 = sbr.rel (0) target = $region37
    $region36: #{tpu_custom_call.1} parent=1 // pred_region
      _
    $region37: #{tpu_custom_call.1} parent=1 // pred_fallthru
      _
    // Predicated region
    $region38: #{tpu_custom_call.1} parent=1 // pred_check
      _
    $region39: #{tpu_custom_call.1} parent=1 // pred_check_branch
      %79 = sbr.rel (0) target = $region41
    $region40: #{tpu_custom_call.1} parent=1 // pred_region
      %81 = dma.done [#allocation3], 32
    $region41: #{tpu_custom_call.1} parent=1 // pred_fallthru
      _
    // Predicated region
    $region42: #{tpu_custom_call.1} parent=1 // pred_check
      _
    $region43: #{tpu_custom_call.1} parent=1 // pred_check_branch
      %83 = sbr.rel (0) target = $region45
    $region44: #{tpu_custom_call.1} parent=1 // pred_region
      %85 = dma.done [#allocation6], 2048
    $region45: #{tpu_custom_call.1} parent=1 // pred_fallthru
      _
    // Predicated region
    $region46: #{tpu_custom_call.1} parent=1 // pred_check
      _
    $region47: #{tpu_custom_call.1} parent=1 // pred_check_branch
      %87 = sbr.rel (0) target = $region49
    $region48: #{tpu_custom_call.1} parent=1 // pred_region
      %89 = dma.done [#allocation6], 1024
    $region49: #{tpu_custom_call.1} parent=1 // pred_fallthru
      _
    // Predicated region
    $region50: #{tpu_custom_call.1} parent=1 // pred_check
      _
    $region51: #{tpu_custom_call.1} parent=1 // pred_check_branch
      %91 = sbr.rel (0) target = $region53
    $region52: #{tpu_custom_call.1} parent=1 // pred_region
      %93 = dma.done [#allocation9], 1024
    $region53: #{tpu_custom_call.1} parent=1 // pred_fallthru
      _
    %v94 = vld [vmem:[#allocation2] sm:$0x3]
    %v95 = vld [vmem:[#allocation5] sm:$0xf]
    %v96 = vld [vmem:[#allocation5 + $0x4] sm:$0xf]
    %v97 = vld [vmem:[#allocation5 + $0x8] sm:$0xf]
    %v98 = vld [vmem:[#allocation5 + $0xc] sm:$0xf]
    %v99 = vld [vmem:[#allocation5 + $0x10] sm:$0xf]
    %v100 = vld [vmem:[#allocation5 + $0x14] sm:$0xf]
    %v101 = vld [vmem:[#allocation5 + $0x18] sm:$0xf]
    %v102 = vld [vmem:[#allocation5 + $0x1c] sm:$0xf]
    %v103 = vld [vmem:[#allocation5 + $0x20] sm:$0xf]
    %v104 = vld [vmem:[#allocation5 + $0x24] sm:$0xf]
    %v105 = vld [vmem:[#allocation5 + $0x28] sm:$0xf]
    %v106 = vld [vmem:[#allocation5 + $0x2c] sm:$0xf]
    %v107 = vld [vmem:[#allocation5 + $0x30] sm:$0xf]
    %v108 = vld [vmem:[#allocation5 + $0x34] sm:$0xf]
    %v109 = vld [vmem:[#allocation5 + $0x38] sm:$0xf]
    %v110 = vld [vmem:[#allocation5 + $0x3c] sm:$0xf]
    %v111 = vld [vmem:[#allocation5 + $0x40] sm:$0xf]
    %v112 = vld [vmem:[#allocation5 + $0x44] sm:$0xf]
    %v113 = vld [vmem:[#allocation5 + $0x48] sm:$0xf]
    %v114 = vld [vmem:[#allocation5 + $0x4c] sm:$0xf]
    %v115 = vld [vmem:[#allocation5 + $0x50] sm:$0xf]
    %v116 = vld [vmem:[#allocation5 + $0x54] sm:$0xf]
    %v117 = vld [vmem:[#allocation5 + $0x58] sm:$0xf]
    %v118 = vld [vmem:[#allocation5 + $0x5c] sm:$0xf]
    %v119 = vld [vmem:[#allocation5 + $0x60] sm:$0xf]
    %v120 = vld [vmem:[#allocation5 + $0x64] sm:$0xf]
    %v121 = vld [vmem:[#allocation5 + $0x68] sm:$0xf]
    %v122 = vld [vmem:[#allocation5 + $0x6c] sm:$0xf]
    %v123 = vld [vmem:[#allocation5 + $0x70] sm:$0xf]
    %v124 = vld [vmem:[#allocation5 + $0x74] sm:$0xf]
    %v125 = vld [vmem:[#allocation5 + $0x78] sm:$0xf]
    %v126 = vld [vmem:[#allocation5 + $0x7c] sm:$0xf]
    %v127 = vld [vmem:[%s2] sm:$0x1]
    %v129 = vperm.slane %v127, 0
    %132 = vst [vmem:[#allocation1] ss:$9 sm:$0xff] %v94
    %v133 = vld [vmem:[#allocation1] sm:$0xff]
    %v134 = vld [vmem:[#allocation1 + $0x9] sm:$0xff]
    %v169 = vunpack.c.l.b16 %v95
    %v170 = vunpack.c.l.b16 %v96
    %v171 = vunpack.c.l.b16 %v97
    %v172 = vunpack.c.l.b16 %v98
    %v173 = vunpack.c.l.b16 %v99
    %v174 = vunpack.c.l.b16 %v100
    %v175 = vunpack.c.l.b16 %v101
    %v176 = vunpack.c.l.b16 %v102
    %v177 = vunpack.c.l.b16 %v103
    %v178 = vunpack.c.l.b16 %v104
    %v179 = vunpack.c.l.b16 %v105
    %v180 = vunpack.c.l.b16 %v106
    %v181 = vunpack.c.l.b16 %v107
    %v182 = vunpack.c.l.b16 %v108
    %v183 = vunpack.c.l.b16 %v109
    %v184 = vunpack.c.l.b16 %v110
    %v185 = vunpack.c.l.b16 %v111
    %v186 = vunpack.c.l.b16 %v112
    %v187 = vunpack.c.l.b16 %v113
    %v188 = vunpack.c.l.b16 %v114
    %v189 = vunpack.c.l.b16 %v115
    %v190 = vunpack.c.l.b16 %v116
    %v191 = vunpack.c.l.b16 %v117
    %v192 = vunpack.c.l.b16 %v118
    %v193 = vunpack.c.l.b16 %v119
    %v194 = vunpack.c.l.b16 %v120
    %v195 = vunpack.c.l.b16 %v121
    %v196 = vunpack.c.l.b16 %v122
    %v197 = vunpack.c.l.b16 %v123
    %v198 = vunpack.c.l.b16 %v124
    %v199 = vunpack.c.l.b16 %v125
    %v200 = vunpack.c.l.b16 %v126
    %v201 = vpack.c.b16 %v170, %v169
    %v202 = vpack.c.b16 %v172, %v171
    %v203 = vpack.c.b16 %v174, %v173
    %v204 = vpack.c.b16 %v176, %v175
    %v205 = vpack.c.b16 %v178, %v177
    %v206 = vpack.c.b16 %v180, %v179
    %v207 = vpack.c.b16 %v182, %v181
    %v208 = vpack.c.b16 %v184, %v183
    %v209 = vpack.c.b16 %v186, %v185
    %v210 = vpack.c.b16 %v188, %v187
    %v211 = vpack.c.b16 %v190, %v189
    %v212 = vpack.c.b16 %v192, %v191
    %v213 = vpack.c.b16 %v194, %v193
    %v214 = vpack.c.b16 %v196, %v195
    %v215 = vpack.c.b16 %v198, %v197
    %v216 = vpack.c.b16 %v200, %v199
    %233 = vmatpush.bf16.msra.mxu0 %v208
    %234 = vmatpush.bf16.msra.mxu0 %v207
    %235 = vmatpush.bf16.msra.mxu0 %v206
    %236 = vmatpush.bf16.msra.mxu0 %v205
    %237 = vmatpush.bf16.msra.mxu0 %v204
    %238 = vmatpush.bf16.msra.mxu0 %v203
    %239 = vmatpush.bf16.msra.mxu0 %v202
    %240 = vmatpush.bf16.msra.mxu0 %v201
    %241 = vmatmul.bf16.gmra.mxu0 %v133
    %v242 = vpop.f32.mrf.mxu0
    %v243 = vadd.f32 %v129, %v242
    %v244 = vpop.f32.mrf.mxu0
    %245 = vdwg.mxu0
    %246 = vmatpush.bf16.msra.mxu0 %v216
    %247 = vmatpush.bf16.msra.mxu0 %v215
    %248 = vmatpush.bf16.msra.mxu0 %v214
    %249 = vmatpush.bf16.msra.mxu0 %v213
    %250 = vmatpush.bf16.msra.mxu0 %v212
    %251 = vmatpush.bf16.msra.mxu0 %v211
    %252 = vmatpush.bf16.msra.mxu0 %v210
    %253 = vmatpush.bf16.msra.mxu0 %v209
    %254 = vmatmul.bf16.gmra.mxu0 %v134
    %v255 = vpop.f32.mrf.mxu0
    %v256 = vadd.f32 %v243, %v255
    %v257 = vpop.f32.mrf.mxu0
    %258 = vdwg.mxu0
    %v259 = vmax.f32 %v256, 0.0
    %v260 = vpack.c.bf16 %v259, %v259
    %v261 = vld [vmem:[#allocation7] sm:$0xf]
    %v262 = vld [vmem:[#allocation7 + $0x4] sm:$0xf]
    %v263 = vld [vmem:[#allocation7 + $0x8] sm:$0xf]
    %v264 = vld [vmem:[#allocation7 + $0xc] sm:$0xf]
    %v265 = vld [vmem:[#allocation7 + $0x10] sm:$0xf]
    %v266 = vld [vmem:[#allocation7 + $0x14] sm:$0xf]
    %v267 = vld [vmem:[#allocation7 + $0x18] sm:$0xf]
    %v268 = vld [vmem:[#allocation7 + $0x1c] sm:$0xf]
    %v269 = vld [vmem:[#allocation7 + $0x20] sm:$0xf]
    %v270 = vld [vmem:[#allocation7 + $0x24] sm:$0xf]
    %v271 = vld [vmem:[#allocation7 + $0x28] sm:$0xf]
    %v272 = vld [vmem:[#allocation7 + $0x2c] sm:$0xf]
    %v273 = vld [vmem:[#allocation7 + $0x30] sm:$0xf]
    %v274 = vld [vmem:[#allocation7 + $0x34] sm:$0xf]
    %v275 = vld [vmem:[#allocation7 + $0x38] sm:$0xf]
    %v276 = vld [vmem:[#allocation7 + $0x3c] sm:$0xf]
    %v277 = vld [vmem:[%s4] sm:$0x1]
    %v279 = vperm.slane %v277, 0
    %v297 = vunpack.c.l.b16 %v261
    %v298 = vunpack.c.l.b16 %v262
    %v299 = vunpack.c.l.b16 %v263
    %v300 = vunpack.c.l.b16 %v264
    %v301 = vunpack.c.l.b16 %v265
    %v302 = vunpack.c.l.b16 %v266
    %v303 = vunpack.c.l.b16 %v267
    %v304 = vunpack.c.l.b16 %v268
    %v305 = vunpack.c.l.b16 %v269
    %v306 = vunpack.c.l.b16 %v270
    %v307 = vunpack.c.l.b16 %v271
    %v308 = vunpack.c.l.b16 %v272
    %v309 = vunpack.c.l.b16 %v273
    %v310 = vunpack.c.l.b16 %v274
    %v311 = vunpack.c.l.b16 %v275
    %v312 = vunpack.c.l.b16 %v276
    %v313 = vpack.c.b16 %v298, %v297
    %v314 = vpack.c.b16 %v300, %v299
    %v315 = vpack.c.b16 %v302, %v301
    %v316 = vpack.c.b16 %v304, %v303
    %v317 = vpack.c.b16 %v306, %v305
    %v318 = vpack.c.b16 %v308, %v307
    %v319 = vpack.c.b16 %v310, %v309
    %v320 = vpack.c.b16 %v312, %v311
    %329 = vmatpush.bf16.msra.mxu0 %v320
    %330 = vmatpush.bf16.msra.mxu0 %v319
    %331 = vmatpush.bf16.msra.mxu0 %v318
    %332 = vmatpush.bf16.msra.mxu0 %v317
    %333 = vmatpush.bf16.msra.mxu0 %v316
    %334 = vmatpush.bf16.msra.mxu0 %v315
    %335 = vmatpush.bf16.msra.mxu0 %v314
    %336 = vmatpush.bf16.msra.mxu0 %v313
    %337 = vmatmul.bf16.gmra.mxu0 %v260
    %v338 = vpop.f32.mrf.mxu0
    %v339 = vadd.f32 %v279, %v338
    %v340 = vpop.f32.mrf.mxu0
    %341 = vdwg.mxu0
    %vm342 = vcmask 1041408
    %v343 = vsel %vm342, %v339, 0.0
    %v344 = vrot.slane %v343, 4
    %v345 = vadd.f32 %v343, %v344
    %v346 = vrot.slane %v345, 2
    %v347 = vadd.f32 %v345, %v346
    %v348 = vrot.slane %v347, 1
    %v349 = vadd.f32 %v347, %v348
    %v350 = vrcp.pop 2.0
    %v351 = vmul.f32 2.0, %v350
    %v352 = vsub.f32 1.0, %v351
    %v353 = vmul.f32 %v350, %v352
    %v354 = vadd.f32 %v350, %v353
    %vm355 = vweird.f32 %v350
    %v356 = vsel %vm355, %v350, %v354
    %v357 = vmul.f32 %v349, %v356
    %v358 = vsub.f32 %v339, %v357
    %v359 = vmul.f32 %v358, %v358
    %v360 = vsel %vm342, %v359, 0.0
    %v361 = vrot.slane %v360, 4
    %v362 = vadd.f32 %v360, %v361
    %v363 = vrot.slane %v362, 2
    %v364 = vadd.f32 %v362, %v363
    %v365 = vrot.slane %v364, 1
    %v366 = vadd.f32 %v364, %v365
    %v367 = vmul.f32 %v366, %v356
    %v368 = vld [vmem:[%s5] sm:$0x1]
    %v369 = vadd.f32 %v367, 1e-05
    %v370 = vrsqrt.pop %v369
    %v371 = vmul.f32 %v370, %v369
    %v372 = vmul.f32 %v371, %v370
    %v373 = vmul.f32 0.5, %v372
    %v374 = vsub.f32 1.5, %v373
    %v375 = vmul.f32 %v370, %v374
    %vm376 = vweird.f32 %v369
    %vm377 = vweird.f32 %v370
    %vm378 = vmor %vm376, %vm377
    %v379 = vsel %vm378, %v370, %v375
    %v380 = vmul.f32 %v368, %v379
    %v381 = vld [vmem:[%s6] sm:$0x1]
    %v382 = vmul.f32 %v357, %v380
    %v383 = vsub.f32 %v381, %v382
    %v385 = vperm.slane %v380, 0
    %v387 = vmul.f32 %v339, %v385
    %v389 = vperm.slane %v383, 0
    %v391 = vadd.f32 %v387, %v389
    %v392 = vmax.f32 %v391, 0.0
    %v393 = vpack.c.bf16 %v392, %v392
    %v394 = vld [vmem:[#allocation8] sm:$0xf]
    %v395 = vld [vmem:[#allocation8 + $0x4] sm:$0xf]
    %v396 = vld [vmem:[#allocation8 + $0x8] sm:$0xf]
    %v397 = vld [vmem:[#allocation8 + $0xc] sm:$0xf]
    %v398 = vld [vmem:[#allocation8 + $0x10] sm:$0xf]
    %v399 = vld [vmem:[#allocation8 + $0x14] sm:$0xf]
    %v400 = vld [vmem:[#allocation8 + $0x18] sm:$0xf]
    %v401 = vld [vmem:[#allocation8 + $0x1c] sm:$0xf]
    %v402 = vld [vmem:[#allocation8 + $0x20] sm:$0xf]
    %v403 = vld [vmem:[#allocation8 + $0x24] sm:$0xf]
    %v404 = vld [vmem:[#allocation8 + $0x28] sm:$0xf]
    %v405 = vld [vmem:[#allocation8 + $0x2c] sm:$0xf]
    %v406 = vld [vmem:[#allocation8 + $0x30] sm:$0xf]
    %v407 = vld [vmem:[#allocation8 + $0x34] sm:$0xf]
    %v408 = vld [vmem:[#allocation8 + $0x38] sm:$0xf]
    %v409 = vld [vmem:[#allocation8 + $0x3c] sm:$0xf]
    %v410 = vld [vmem:[%s8] sm:$0x1]
    %v412 = vperm.slane %v410, 0
    %v430 = vunpack.c.l.b16 %v394
    %v431 = vunpack.c.l.b16 %v395
    %v432 = vunpack.c.l.b16 %v396
    %v433 = vunpack.c.l.b16 %v397
    %v434 = vunpack.c.l.b16 %v398
    %v435 = vunpack.c.l.b16 %v399
    %v436 = vunpack.c.l.b16 %v400
    %v437 = vunpack.c.l.b16 %v401
    %v438 = vunpack.c.l.b16 %v402
    %v439 = vunpack.c.l.b16 %v403
    %v440 = vunpack.c.l.b16 %v404
    %v441 = vunpack.c.l.b16 %v405
    %v442 = vunpack.c.l.b16 %v406
    %v443 = vunpack.c.l.b16 %v407
    %v444 = vunpack.c.l.b16 %v408
    %v445 = vunpack.c.l.b16 %v409
    %v446 = vpack.c.b16 %v431, %v430
    %v447 = vpack.c.b16 %v433, %v432
    %v448 = vpack.c.b16 %v435, %v434
    %v449 = vpack.c.b16 %v437, %v436
    %v450 = vpack.c.b16 %v439, %v438
    %v451 = vpack.c.b16 %v441, %v440
    %v452 = vpack.c.b16 %v443, %v442
    %v453 = vpack.c.b16 %v445, %v444
    %462 = vmatpush.bf16.msra.mxu0 %v453
    %463 = vmatpush.bf16.msra.mxu0 %v452
    %464 = vmatpush.bf16.msra.mxu0 %v451
    %465 = vmatpush.bf16.msra.mxu0 %v450
    %466 = vmatpush.bf16.msra.mxu0 %v449
    %467 = vmatpush.bf16.msra.mxu0 %v448
    %468 = vmatpush.bf16.msra.mxu0 %v447
    %469 = vmatpush.bf16.msra.mxu0 %v446
    %470 = vmatmul.bf16.gmra.mxu0 %v393
    %v471 = vpop.f32.mrf.mxu0
    %v472 = vadd.f32 %v412, %v471
    %v473 = vpop.f32.mrf.mxu0
    %474 = vdwg.mxu0
    %475 = vst [vmem:[#allocation10] sm:$0x3] %v472
    // Predicated region
    $region54: #{tpu_custom_call.1} parent=1 // pred_check
      _
    $region55: #{tpu_custom_call.1} parent=1 // pred_check_branch
      %477 = sbr.rel (0) target = $region57
    $region56: #{tpu_custom_call.1} parent=1 // pred_region
      %479 = vsyncadd [#allocation4], 0
      %s481 = sshll.u32 [#allocation10], 4
      %s482 = int_to_ptr.vmem [resolvable:$true] %s481
      %s483 = sshll.u32 %s9, 4
      %s484 = int_to_ptr.hbm [resolvable:$true] %s483
      %486 = dma.vmem_to_hbm [thread:$0]  %s482, 32, %s484, [#allocation4]
    $region57: #{tpu_custom_call.1} parent=1 // pred_fallthru
      _
    // Predicated region
    $region58: #{tpu_custom_call.1} parent=1 // pred_check
      _
    $region59: #{tpu_custom_call.1} parent=1 // pred_check_branch
      %488 = sbr.rel (0) target = $region61
    $region60: #{tpu_custom_call.1} parent=1 // pred_region
      %490 = dma.done [#allocation4], 32
    $region61: #{tpu_custom_call.1} parent=1 // pred_fallthru
      _
    %491 = vsyncpa [#allocation3], 1
    %492 = vsyncpa [#allocation6], 1
    %493 = vsyncpa [#allocation9], 1
    %494 = vsyncpa [#allocation4], 1

</llo_original>
